<compile_context>
chip_gen: v6e
topology: v6e:2x2x1
jax: 0.10.0
libtpu: 0.0.40
codegen_flags: <defaults>
</compile_context>

<pallas_src>
import functools

import jax
import jax.numpy as jnp
from jax import lax
from jax.experimental import pallas as pl
from jax.experimental.pallas import tpu as pltpu


def _vmem_capacity_bytes():
    try:
        return int(pltpu.get_tpu_info().vmem_capacity_bytes)
    except Exception:
        return 64 << 20  # conservative (v7x physical VMEM)


def _num_tensorcores():
    """Best-effort TensorCore count per device (2 only on megacore-style chips)."""
    try:
        dev = jax.devices()[0]
        n = getattr(dev, "num_cores", None)
        if isinstance(n, int) and n > 0:
            return n
        kind = str(getattr(dev, "device_kind", "")).lower()
        if "v7" in kind:
            return 2
    except Exception:
        pass
    return 1


def _gram_kernel(f_ref, g_ref, *, tk, hw, nk, masked):
    """Accumulate a partial Gram: G += f_tile @ f_tile.T (f32 accumulation)."""
    k = pl.program_id(1)

    @pl.when(k == 0)
    def _():
        g_ref[...] = jnp.zeros_like(g_ref)

    f = f_ref[...]  # (C, tk) tile
    if masked:
        # Zero lanes beyond the true H*W extent: covers the ragged last tile
        # and any fully-redundant (index-clamped) trailing tiles of a split.
        p = pl.program_id(0)
        start = (p * nk + k) * tk
        col = start + lax.broadcasted_iota(jnp.int32, f.shape, 1)
        f = jnp.where(col < hw, f, jnp.zeros_like(f))

    # G += f @ f.T without materializing f.T: contract axis 1 of both operands.
    g_ref[...] += lax.dot_general(
        f, f,
        dimension_numbers=(((1,), (1,)), ((), ())),
        preferred_element_type=jnp.float32,
    )


def style_loss_forward(x, target_gram, weight=1.0, *, tk=None, n_split=None):
    """Mimics StyleLoss.forward: returns (input_unchanged, loss)."""
    b, c, h, w = x.shape
    assert b == 1, "gram_matrix's view(c, h*w) implies batch == 1"
    hw = h * w
    inv_denom = 1.0 / float(c * hw)
    f = x.reshape(c, hw)
    dtype_bytes = jnp.dtype(x.dtype).itemsize

    vmem_cap = _vmem_capacity_bytes()
    # Double-buffered input-tile budget: ~48 MiB on 128 MiB chips, ~24 MiB on v7x.
    tile_budget = max(16 << 20, (vmem_cap * 3) // 8)

    # --- tile-size / split selection -----------------------------------------
    if tk is None:
        tk_budget = max(128, ((tile_budget // (2 * c * dtype_bytes)) // 128) * 128)
        tk = hw if hw <= tk_budget else min(8192, tk_budget)

    if tk >= hw:
        # Single-step fast path: one resident block, no masking, no split.
        tk, n_split, nk, n_tiles = hw, 1, 1, 1
        clamp = False
        masked = False
    else:
        tk = max(128, (tk // 128) * 128)          # (8,128) lane rule
        n_tiles = pl.cdiv(hw, tk)
        if n_split is None:
            n_split = min(2, _num_tensorcores())  # 2 only on multi-TC chips
        if n_tiles < 2 * n_split:
            n_split = 1                           # don't split tiny reductions
        nk = pl.cdiv(n_tiles, n_split)
        clamp = n_split * nk > n_tiles            # redundant trailing block(s)
        masked = clamp or (hw % tk != 0)          # ragged last tile

    # Explicit VMEM limit: double-buffered f tiles + resident partial-Gram block.
    vmem_bytes = 2 * c * tk * dtype_bytes + 2 * c * c * 4 + (2 << 20)
    vmem_limit = int(min(max(vmem_bytes, 16 << 20), (vmem_cap * 3) // 4))

    if clamp:
        last_tile = n_tiles - 1

        def f_index(p, k):
            # Clamp so no DMA window starts past the array; the kernel mask
            # zeroes the redundant block's contribution.
            return (0, jnp.minimum(p * nk + k, last_tile))
    else:
        def f_index(p, k):
            return (0, p * nk + k)

    kernel = functools.partial(_gram_kernel, tk=tk, hw=hw, nk=nk, masked=masked)

    gram_partials = pl.pallas_call(
        kernel,
        out_shape=jax.ShapeDtypeStruct((n_split, c, c), jnp.float32),
        grid_spec=pltpu.PrefetchScalarGridSpec(
            num_scalar_prefetch=0,
            grid=(n_split, nk),
            in_specs=[pl.BlockSpec((c, tk), f_index)],
            # Resident (C, C) partial-Gram output per split, reduction axis last.
            out_specs=pl.BlockSpec((None, c, c), lambda p, k: (p, 0, 0)),
        ),
        compiler_params=pltpu.CompilerParams(
            dimension_semantics=("parallel", "arbitrary"),
            vmem_limit_bytes=vmem_limit,
        ),
    )(f)

    # Hoisted out of the kernel: partial-sum combine, 1/(c*h*w) scale, tiny MSE.
    G = gram_partials.sum(axis=0) * inv_denom
    diff = G - target_gram.astype(jnp.float32)
    loss = weight * jnp.mean(diff * diff)
    return x, loss


def gram_matrix_ref(x):
    b, c, h, w = x.shape
    f = x.reshape(c, h * w)
    return (f @ f.T) / (c * h * w)


def _check(x, target_gram, weight, **kw):
    out, loss = style_loss_forward(x, target_gram, weight=weight, **kw)
    out = jax.block_until_ready(out)
    loss = jax.block_until_ready(loss)
    loss_ref = weight * jnp.mean((gram_matrix_ref(x) - target_gram) ** 2)
    assert jnp.allclose(out, x), "forward must return input unchanged"
    assert jnp.allclose(loss, loss_ref, rtol=1e-4, atol=1e-6), (loss, loss_ref)


if __name__ == "__main__":
    key = jax.random.PRNGKey(0)
    k1, k2, k3, k4, k5, k6 = jax.random.split(key, 6)

    # Case 1: tiny lane-aligned map (16x16) -> single-step fast path.
    x = jax.random.normal(k1, (1, 8, 16, 16), dtype=jnp.float32)
    tgt = gram_matrix_ref(jax.random.normal(k2, (1, 8, 16, 16), dtype=jnp.float32))
    _check(x, tgt, 1.0)

    # Case 2: ragged spatial size (14x14) -> still fast path, no pad/mask needed.
    x = jax.random.normal(k3, (1, 8, 14, 14), dtype=jnp.float32)
    tgt = gram_matrix_ref(jax.random.normal(k4, (1, 8, 14, 14), dtype=jnp.float32))
    _check(x, tgt, 1.0)

    # Case 3: tiled reduction, even division, single split (forced small tk).
    x = jax.random.normal(k5, (1, 8, 64, 64), dtype=jnp.float32)
    tgt = gram_matrix_ref(jax.random.normal(k6, (1, 8, 64, 64), dtype=jnp.float32))
    _check(x, tgt, 0.5, tk=256, n_split=1)

    # Case 4: ragged last tile + 2-way split with an odd tile count
    # (exercises the in-kernel mask and the clamped index map).
    x = jax.random.normal(k1, (1, 16, 56, 56), dtype=jnp.float32)
    tgt = gram_matrix_ref(jax.random.normal(k2, (1, 16, 56, 56), dtype=jnp.float32))
    _check(x, tgt, 1.0, tk=512, n_split=2)

    print("KERNEL_OK")
</pallas_src>

<mosaic_0001>
module attributes {stable_mosaic.version = 11 : i64} {
  func.func @_gram_kernel(%arg0: i32, %arg1: i32, %arg2: memref<8x256xf32, #tpu.memory_space<vmem>>, %arg3: memref<1x8x8xf32, #tpu.memory_space<vmem>>) attributes {dimension_semantics = [#tpu.dimension_semantics<parallel>, #tpu.dimension_semantics<arbitrary>], iteration_bounds = array<i64: 1, 1>, scalar_prefetch = 0 : i64, scratch_operands = 0 : i64, tpu.core_type = #tpu.core_type<tc>, window_params = [{transform_indices = @transform_0, window_bounds = array<i64: 8, 256>}, {transform_indices = @transform_1, window_bounds = array<i64: 1, 8, 8>}]} {
    %c0_i32 = arith.constant 0 : i32
    %0 = arith.cmpi eq, %arg1, %c0_i32 : i32
    %1 = arith.extui %0 : i1 to i32
    %c0_i32_0 = arith.constant 0 : i32
    %2 = arith.cmpi ne, %1, %c0_i32_0 : i32
    scf.if %2 {
      %cst_8 = arith.constant 0.000000e+00 : f32
      %11 = vector.broadcast %cst_8 : f32 to vector<8x8xf32>
      %c0_9 = arith.constant 0 : index
      %c0_10 = arith.constant 0 : index
      %c0_11 = arith.constant 0 : index
      %12 = vector.load %arg3[%c0_9, %c0_10, %c0_11] : memref<1x8x8xf32, #tpu.memory_space<vmem>>, vector<1x8x8xf32>
      %13 = vector.shape_cast %12 : vector<1x8x8xf32> to vector<8x8xf32>
      %14 = vector.shape_cast %11 : vector<8x8xf32> to vector<1x8x8xf32>
      tpu.vector_store %arg3[%c0_9, %c0_10, %c0_11], %14 {strides = array<i32>} : memref<1x8x8xf32, #tpu.memory_space<vmem>>, vector<1x8x8xf32>,
    } else {
    }
    %c0 = arith.constant 0 : index
    %c0_1 = arith.constant 0 : index
    %3 = vector.load %arg2[%c0, %c0_1] : memref<8x256xf32, #tpu.memory_space<vmem>>, vector<8x256xf32>
    %c0_2 = arith.constant 0 : index
    %c0_3 = arith.constant 0 : index
    %c0_4 = arith.constant 0 : index
    %4 = vector.load %arg3[%c0_2, %c0_3, %c0_4] : memref<1x8x8xf32, #tpu.memory_space<vmem>>, vector<1x8x8xf32>
    %5 = vector.shape_cast %4 : vector<1x8x8xf32> to vector<8x8xf32>
    %cst = arith.constant dense<0.000000e+00> : vector<8x8xf32>
    %6 = tpu.matmul %3, %3, %cst {dimension_numbers = #tpu.dot_dimension_numbers<[1], [1], [0], [0], [0, 0, 1, 0], [], []>} : vector<8x256xf32>, vector<8x256xf32>, vector<8x8xf32> -> vector<8x8xf32>
    %7 = arith.addf %5, %6 : vector<8x8xf32>
    %c0_5 = arith.constant 0 : index
    %c0_6 = arith.constant 0 : index
    %c0_7 = arith.constant 0 : index
    %8 = vector.load %arg3[%c0_5, %c0_6, %c0_7] : memref<1x8x8xf32, #tpu.memory_space<vmem>>, vector<1x8x8xf32>
    %9 = vector.shape_cast %8 : vector<1x8x8xf32> to vector<8x8xf32>
    %10 = vector.shape_cast %7 : vector<8x8xf32> to vector<1x8x8xf32>
    tpu.vector_store %arg3[%c0_5, %c0_6, %c0_7], %10 {strides = array<i32>} : memref<1x8x8xf32, #tpu.memory_space<vmem>>, vector<1x8x8xf32>,
    return
  }
  func.func @transform_0(%arg0: i32, %arg1: i32) -> (i32, i32) {
    %c1_i32 = arith.constant 1 : i32
    %0 = arith.muli %arg0, %c1_i32 : i32
    %1 = arith.addi %0, %arg1 : i32
    %c0_i32 = arith.constant 0 : i32
    %c0_i32_0 = arith.constant 0 : i32
    return %c0_i32, %1 : i32, i32
  }
  func.func @transform_1(%arg0: i32, %arg1: i32) -> (i32, i32, i32) {
    %c0_i32 = arith.constant 0 : i32
    %c0_i32_0 = arith.constant 0 : i32
    %c0_i32_1 = arith.constant 0 : i32
    return %arg0, %c0_i32, %c0_i32_0 : i32, i32, i32
  }
}

</mosaic_0001>

<llo_original>
// kernel: tpu_custom_call.1
$region0: #{tpu_custom_call.1}
  #allocation0 [shape = 'u32[]', space=smem, size = 0x4, offset = 0x4, fixed_abs, tag = 'smem constant byte address 0x4 - core index']
  #allocation1 [shape = 'u32[144,128]{1,0:T(1,128)}', space=vmem, size = 0x12000, scoped, tag = 'internal scratch']
  %s0 = inlined_call_operand.hbm [shape: f32[8,256], index: 0, kind: input, shape index: {}]
  %s1 = inlined_call_operand.hbm [shape: f32[1,8,8], index: 1, kind: output, shape index: {}]
  %s2 = sld [smem:[#allocation0]]
  $region22: #{tpu_custom_call.1} parent=0
    _
  %s4 = ssub.s32 1, %s2
  %s5 = scalar_select 0, %s4, %s2
  $region1: #{tpu_custom_call.1} parent=0
    #allocation2 [shape = 'u8[8192]{0}', space=vmem, size = 0x2000, scoped, tag = 'input window, operand 0, single buffered']
    #allocation3 [shape = 's32[1]{0}', space=sflag, size = 0x4, scoped, tag = 'scoped memory for tpu_custom_call.1']
    #allocation4 [shape = 's32[1]{0}', space=sflag, size = 0x4, scoped, tag = 'scoped memory for tpu_custom_call.1']
    #allocation5 [shape = 'u8[4096]{0}', space=vmem, size = 0x1000, scoped, tag = 'output window, operand 0, single buffered']
    %6 = vsyncpa [#allocation3], 0
    %7 = vsyncpa [#allocation4], 0
    // Predicated region
    $region2: #{tpu_custom_call.1} parent=1 // pred_check
      _
    $region3: #{tpu_custom_call.1} parent=1 // pred_check_branch
      %9 = sbr.rel (0) target = $region5
    $region4: #{tpu_custom_call.1} parent=1 // pred_region
      %s10 = sadd.s32 0, 0
      %s11 = smul.u32 2, %s10
      %s13 = ssub.s32 256, 256
      %14 = vsyncadd [#allocation3], %s13
      %s15 = smul.addr %s11, 128
      %s16 = scalar_lea.hbm %s0, %s15
      %s18 = sshll.u32 [#allocation2], 4
      %s19 = int_to_ptr.vmem [resolvable:$true] %s18
      %21 = dma.hbm_to_vmem [thread:$0]  %s16, 256, %s19, [#allocation3]
    $region5: #{tpu_custom_call.1} parent=1 // pred_fallthru
      _
    // Predicated region
    $region6: #{tpu_custom_call.1} parent=1 // pred_check
      _
    $region7: #{tpu_custom_call.1} parent=1 // pred_check_branch
      %23 = sbr.rel (0) target = $region9
    $region8: #{tpu_custom_call.1} parent=1 // pred_region
      %24 = dma.done [#allocation3], 256
    $region9: #{tpu_custom_call.1} parent=1 // pred_fallthru
      _
    %s25 = sadd.s32 0, 0
    %s26 = smul.u32 2, %s25
    %p27 = scmp.eq.s32.totalorder 0, 0
    // Predicated region
    $region10: #{tpu_custom_call.1} parent=1 // pred_check
      %p28 = pneg %p27
    $region11: #{tpu_custom_call.1} parent=1 // pred_check_branch
      %30 = sbr.rel (%p28) target = $region13
    $region12: #{tpu_custom_call.1} parent=1 // pred_region
      %vm31 = vcmask 64512
      %32 = vst.msk [vmem:[#allocation5] sm:$0xff] %vm31, 0.0
    $region13: #{tpu_custom_call.1} parent=1 // pred_fallthru
      _
    %v33 = vld [vmem:[#allocation2] sm:$0xff]
    %v34 = vld [vmem:[#allocation2 + $0x8] sm:$0xff]
    %v35 = vld [vmem:[#allocation5] sm:$0xff]
    %36 = vmatprep.subr.mxu0 0.0
    %37 = vmatpush1.xpose.msra.mxu0 0.0
    %38 = vmatprep.subr.mxu0 0.0
    %39 = vmatpush1.xpose.msra.mxu0 0.0
    %40 = vmatprep.subr.mxu0 0.0
    %41 = vmatpush1.xpose.msra.mxu0 0.0
    %42 = vmatprep.subr.mxu0 0.0
    %43 = vmatpush1.xpose.msra.mxu0 0.0
    %44 = vmatprep.subr.mxu0 0.0
    %45 = vmatpush1.xpose.msra.mxu0 0.0
    %46 = vmatprep.subr.mxu0 0.0
    %47 = vmatpush1.xpose.msra.mxu0 0.0
    %48 = vmatprep.subr.mxu0 0.0
    %49 = vmatpush1.xpose.msra.mxu0 0.0
    %50 = vmatprep.subr.mxu0 0.0
    %51 = vmatpush1.xpose.msra.mxu0 0.0
    %52 = vmatprep.subr.mxu0 0.0
    %53 = vmatpush1.xpose.msra.mxu0 0.0
    %54 = vmatprep.subr.mxu0 0.0
    %55 = vmatpush1.xpose.msra.mxu0 0.0
    %56 = vmatprep.subr.mxu0 0.0
    %57 = vmatpush1.xpose.msra.mxu0 0.0
    %58 = vmatprep.subr.mxu0 0.0
    %59 = vmatpush1.xpose.msra.mxu0 0.0
    %60 = vmatprep.subr.mxu0 0.0
    %61 = vmatpush1.xpose.msra.mxu0 0.0
    %62 = vmatprep.subr.mxu0 0.0
    %63 = vmatpush1.xpose.msra.mxu0 0.0
    %64 = vmatprep.subr.mxu0 0.0
    %65 = vmatpush1.xpose.msra.mxu0 0.0
    %66 = vmatprep.subr.mxu0 %v34
    %67 = vmatpush1.xpose.msra.mxu0 %v33
    %68 = vmatprep.subr.mxu0 0.0
    %69 = vmatpush2.xpose.msra.mxu0 0.0
    %70 = vmatprep.subr.mxu0 0.0
    %71 = vmatpush2.xpose.msra.mxu0 0.0
    %72 = vmatprep.subr.mxu0 0.0
    %73 = vmatpush2.xpose.msra.mxu0 0.0
    %74 = vmatprep.subr.mxu0 0.0
    %75 = vmatpush2.xpose.msra.mxu0 0.0
    %76 = vmatprep.subr.mxu0 0.0
    %77 = vmatpush2.xpose.msra.mxu0 0.0
    %78 = vmatprep.subr.mxu0 0.0
    %79 = vmatpush2.xpose.msra.mxu0 0.0
    %80 = vmatprep.subr.mxu0 0.0
    %81 = vmatpush2.xpose.msra.mxu0 0.0
    %82 = vmatprep.subr.mxu0 0.0
    %83 = vmatpush2.xpose.msra.mxu0 0.0
    %84 = vmatprep.subr.mxu0 0.0
    %85 = vmatpush2.xpose.msra.mxu0 0.0
    %86 = vmatprep.subr.mxu0 0.0
    %87 = vmatpush2.xpose.msra.mxu0 0.0
    %88 = vmatprep.subr.mxu0 0.0
    %89 = vmatpush2.xpose.msra.mxu0 0.0
    %90 = vmatprep.subr.mxu0 0.0
    %91 = vmatpush2.xpose.msra.mxu0 0.0
    %92 = vmatprep.subr.mxu0 0.0
    %93 = vmatpush2.xpose.msra.mxu0 0.0
    %94 = vmatprep.subr.mxu0 0.0
    %95 = vmatpush2.xpose.msra.mxu0 0.0
    %96 = vmatprep.subr.mxu0 0.0
    %97 = vmatpush2.xpose.msra.mxu0 0.0
    %98 = vmatprep.subr.mxu0 0.0
    %99 = vmatpush2.xpose.msra.mxu0 0.0
    %100 = vmatprep.mubr.f32.mxu0 %v34
    %101 = vmatmul.mubr.f32.gmra.mxu0 %v33
    %v102 = vpop.f32.mrf.mxu0
    %v103 = vadd.f32 0.0, %v102
    %v104 = vpop.f32.mrf.mxu0
    %105 = vdwg.mxu0
    %v106 = vadd.f32 %v35, %v103
    %vm107 = vcmask 64512
    %108 = vst.msk [vmem:[#allocation5] sm:$0xff] %vm107, %v106
    // Predicated region
    $region14: #{tpu_custom_call.1} parent=1 // pred_check
      _
    $region15: #{tpu_custom_call.1} parent=1 // pred_check_branch
      %110 = sbr.rel (0) target = $region17
    $region16: #{tpu_custom_call.1} parent=1 // pred_region
      %s112 = ssub.s32 128, 128
      %113 = vsyncadd [#allocation4], %s112
      %s115 = sshll.u32 [#allocation5], 4
      %s116 = int_to_ptr.vmem [resolvable:$true] %s115
      %118 = dma.vmem_to_hbm [thread:$0]  %s116, 128, %s1, [#allocation4]
    $region17: #{tpu_custom_call.1} parent=1 // pred_fallthru
      _
    // Predicated region
    $region18: #{tpu_custom_call.1} parent=1 // pred_check
      _
    $region19: #{tpu_custom_call.1} parent=1 // pred_check_branch
      %120 = sbr.rel (0) target = $region21
    $region20: #{tpu_custom_call.1} parent=1 // pred_region
      %121 = dma.done [#allocation4], 128
    $region21: #{tpu_custom_call.1} parent=1 // pred_fallthru
      _
    %122 = vsyncpa [#allocation3], 1
    %123 = vsyncpa [#allocation4], 1

</llo_original>
